<compile_context>
chip_gen: v7x
topology: tpu7x:2x2x1
jax: 0.10.0
libtpu: 0.0.40
codegen_flags: <defaults>
</compile_context>

<pallas_src>
import jax
import jax.numpy as jnp
from jax import lax
from jax.experimental import pallas as pl
from jax.experimental.pallas import tpu as pltpu

# ----- module sizes (from KuaishouDIN.__init__ / user_net factory) -----
USER_SIZE = 1        # self.user_size = 1
USER_EMB0 = 5        # nn.Embedding(user_size, 5)
USER_EMB1 = 32       # nn.Embedding(user_size * 5, 32)
PHOTO_FEATURE_SIZE = 2048

# ----- TPU tiling -----
U_PAD = 8            # fused-table rows padded to the f32 sublane multiple
BATCH_TILE = 1024    # rows per grid step (lane-aligned; amortizes ~0.35us/step)
                     # NOTE(v7x): keep production B >= 2*BATCH_TILE so the
                     # "parallel" grid axis has >= 2 steps for both TensorCores.


def user_branch_kernel(uid_ref, fused_ref, out_ref):
    """One batch tile of the user branch.

    uid_ref   : [1, tile]            int32   lane-dense user ids for this tile
    fused_ref : [U_PAD, USER_EMB1]   float32 fused table E0 @ E1 (zero padded)
    out_ref   : [tile, USER_EMB1]    float32 user vectors
    """
    uid = uid_ref[...]                                           # (1, tile)
    tile = out_ref.shape[0]
    # One-hot in (table_row, batch) orientation: built with a sublane iota so
    # no lane<->sublane relayout of the ids is needed.
    onehot_t = (uid == lax.broadcasted_iota(jnp.int32, (U_PAD, tile), 0)
                ).astype(jnp.float32)                            # (U_PAD, tile)
    # Single fused lookup: onehot_t^T @ fused  -> (tile, 32) on the MXU.
    out_ref[...] = lax.dot_general(
        onehot_t, fused_ref[...],
        dimension_numbers=(((0,), (0,)), ((), ())),
        preferred_element_type=jnp.float32)


def init_params(key):
    """Deterministic parameter init (shapes from user_net()).

    The fused, padded lookup table is precomputed ONCE here so the per-call
    path never re-materializes padded constants.
    """
    k0, k1 = jax.random.split(key)
    e0 = jax.random.normal(k0, (USER_SIZE, USER_EMB0), jnp.float32)
    e1 = jax.random.normal(k1, (USER_EMB0, USER_EMB1), jnp.float32)
    fused = jnp.zeros((U_PAD, USER_EMB1), jnp.float32).at[:USER_SIZE].set(e0 @ e1)
    return {"user_emb0": e0, "user_emb1": e1, "user_fused_pad": fused}


def kuaishou_din_forward(train_data, data_feature, params):
    """Mirrors KuaishouDIN.forward(train_data, data_feature).

    train_data  : [B, 3] int   (user_id, hist, candidate)
    data_feature: [B, 2048]    (unused by the reference forward)
    returns     : [B, 32] float32 user vector
    """
    del data_feature  # not consumed by the reference forward
    B = train_data.shape[0]

    user_id = train_data[:, 0].astype(jnp.int32)                 # train_data[:, 0]
    # hist = train_data[:, 1]; candidate = train_data[:, 2]  (sliced but unused)

    uid = user_id[None, :]                                       # (1, B) lane-dense

    # Exact-fit block for small batches; 1024-row tiles (ragged last block
    # handled by Pallas) for large ones.  No wrapper pad, no output slice.
    batch_tile = min(BATCH_TILE, B)
    n_tiles = pl.cdiv(B, batch_tile)

    cost = pl.CostEstimate(
        flops=2 * B * U_PAD * USER_EMB1,
        transcendentals=0,
        bytes_accessed=B * 4 + U_PAD * USER_EMB1 * 4 + B * USER_EMB1 * 4,
    )

    out = pl.pallas_call(
        user_branch_kernel,
        out_shape=jax.ShapeDtypeStruct((B, USER_EMB1), jnp.float32),
        grid=(n_tiles,),
        in_specs=[
            pl.BlockSpec((1, batch_tile), lambda i: (0, i)),
            pl.BlockSpec((U_PAD, USER_EMB1), lambda i: (0, 0)),   # table resident
        ],
        out_specs=pl.BlockSpec((batch_tile, USER_EMB1), lambda i: (i, 0)),
        compiler_params=pltpu.CompilerParams(
            dimension_semantics=("parallel",)),
        cost_estimate=cost,
    )(uid, params["user_fused_pad"])

    return out


def _reference_forward(train_data, params):
    """Pure-JAX reference of the same semantics (sanity check)."""
    user_id = train_data[:, 0].astype(jnp.int32)
    user_emb = params["user_emb0"][user_id]            # [B, 5]
    return user_emb @ params["user_emb1"]              # [B, 32] soft lookup


if __name__ == "__main__":
    key = jax.random.PRNGKey(0)
    k_data, k_feat, k_param = jax.random.split(key, 3)
    params = init_params(k_param)

    # Small-shape check (B = 2), as in the module's intended usage.
    B = 2
    train_data = jax.random.randint(k_data, (B, 3), 0, USER_SIZE).astype(jnp.int32)
    data_feature = jax.random.normal(k_feat, (B, PHOTO_FEATURE_SIZE), jnp.float32)

    out = kuaishou_din_forward(train_data, data_feature, params)
    jax.block_until_ready(out)

    ref = _reference_forward(train_data, params)
    assert out.shape == (B, USER_EMB1)
    assert jnp.allclose(out, ref, rtol=1e-5, atol=1e-5)

    # Exercise the multi-tile + ragged-final-block path (B not a tile multiple).
    B2 = 1500
    td2 = jax.random.randint(k_data, (B2, 3), 0, USER_SIZE).astype(jnp.int32)
    df2 = jnp.zeros((B2, PHOTO_FEATURE_SIZE), jnp.float32)
    out2 = kuaishou_din_forward(td2, df2, params)
    jax.block_until_ready(out2)
    assert out2.shape == (B2, USER_EMB1)
    assert jnp.allclose(out2, _reference_forward(td2, params), rtol=1e-5, atol=1e-5)

    print("KERNEL_OK")
</pallas_src>

<mosaic_0001>
module attributes {stable_mosaic.version = 11 : i64} {
  func.func @user_branch_kernel(%arg0: i32, %arg1: memref<1x2xi32, #tpu.memory_space<vmem>>, %arg2: memref<8x32xf32, #tpu.memory_space<vmem>>, %arg3: memref<2x32xf32, #tpu.memory_space<vmem>>) attributes {dimension_semantics = [#tpu.dimension_semantics<parallel>], iteration_bounds = array<i64: 1>, scalar_prefetch = 0 : i64, scratch_operands = 0 : i64, tpu.core_type = #tpu.core_type<tc>, window_params = [{transform_indices = @transform_0, window_bounds = array<i64: 1, 2>}, {pipeline_mode = #tpu.pipeline_mode<synchronous>, transform_indices = @transform_1, window_bounds = array<i64: 8, 32>}, {transform_indices = @transform_2, window_bounds = array<i64: 2, 32>}]} {
    %c0 = arith.constant 0 : index
    %c0_0 = arith.constant 0 : index
    %0 = vector.load %arg1[%c0, %c0_0] : memref<1x2xi32, #tpu.memory_space<vmem>>, vector<1x2xi32>
    %1 = tpu.iota {dimensions = array<i32: 0>} : vector<8x2xi32>
    %2 = vector.broadcast %0 : vector<1x2xi32> to vector<8x2xi32>
    %3 = arith.cmpi eq, %2, %1 : vector<8x2xi32>
    %4 = arith.extui %3 : vector<8x2xi1> to vector<8x2xi32>
    %5 = arith.sitofp %4 : vector<8x2xi32> to vector<8x2xf32>
    %c0_1 = arith.constant 0 : index
    %c0_2 = arith.constant 0 : index
    %6 = vector.load %arg2[%c0_1, %c0_2] : memref<8x32xf32, #tpu.memory_space<vmem>>, vector<8x32xf32>
    %cst = arith.constant dense<0.000000e+00> : vector<2x32xf32>
    %7 = tpu.matmul %5, %6, %cst {dimension_numbers = #tpu.dot_dimension_numbers<[0], [0], [1], [1], [0, 1, 1, 1], [], []>} : vector<8x2xf32>, vector<8x32xf32>, vector<2x32xf32> -> vector<2x32xf32>
    %c0_3 = arith.constant 0 : index
    %c0_4 = arith.constant 0 : index
    %8 = vector.load %arg3[%c0_3, %c0_4] : memref<2x32xf32, #tpu.memory_space<vmem>>, vector<2x32xf32>
    tpu.vector_store %arg3[%c0_3, %c0_4], %7 {strides = array<i32>} : memref<2x32xf32, #tpu.memory_space<vmem>>, vector<2x32xf32>,
    return
  }
  func.func @transform_0(%arg0: i32) -> (i32, i32) {
    %c0_i32 = arith.constant 0 : i32
    %c0_i32_0 = arith.constant 0 : i32
    return %c0_i32, %arg0 : i32, i32
  }
  func.func @transform_1(%arg0: i32) -> (i32, i32) {
    %c0_i32 = arith.constant 0 : i32
    %c0_i32_0 = arith.constant 0 : i32
    %c0_i32_1 = arith.constant 0 : i32
    return %c0_i32, %c0_i32_0 : i32, i32
  }
  func.func @transform_2(%arg0: i32) -> (i32, i32) {
    %c0_i32 = arith.constant 0 : i32
    %c0_i32_0 = arith.constant 0 : i32
    return %arg0, %c0_i32 : i32, i32
  }
}

</mosaic_0001>

<llo_original>
// kernel: tpu_custom_call.1
$region0: #{tpu_custom_call.1}
  #allocation0 [shape = 'u32[]', space=smem, size = 0x4, offset = 0x4, fixed_abs, tag = 'smem constant byte address 0x4 - core index']
  #allocation1 [shape = 'u32[144,128]{1,0:T(1,128)}', space=vmem, size = 0x12000, scoped, tag = 'internal scratch']
  %s0 = inlined_call_operand.hbm [shape: s32[1,2], index: 0, kind: input, shape index: {}]
  %s1 = inlined_call_operand.hbm [shape: f32[8,32], index: 1, kind: input, shape index: {}]
  %s2 = inlined_call_operand.hbm [shape: f32[2,32], index: 2, kind: output, shape index: {}]
  %s3 = sld [smem:[#allocation0]]
  $region26: #{tpu_custom_call.1} parent=0
    _
  %s5 = ssub.s32 1, %s3
  %s6 = scalar_select 0, %s5, %s3
  $region1: #{tpu_custom_call.1} parent=0
    #allocation2 [shape = 'u8[512]{0}', space=vmem, size = 0x400, scoped, tag = 'input window, operand 0, single buffered']
    #allocation3 [shape = 's32[1]{0}', space=sflag, size = 0x4, scoped, tag = 'scoped memory for tpu_custom_call.1']
    #allocation4 [shape = 's32[1]{0}', space=sflag, size = 0x4, scoped, tag = 'scoped memory for tpu_custom_call.1']
    #allocation5 [shape = 'u8[4096]{0}', space=vmem, size = 0x1000, scoped, tag = 'input window, operand 1, single buffered']
    #allocation6 [shape = 's32[1]{0}', space=sflag, size = 0x4, scoped, tag = 'scoped memory for tpu_custom_call.1']
    #allocation7 [shape = 'u8[1024]{0}', space=vmem, size = 0x400, scoped, tag = 'output window, operand 0, single buffered']
    %7 = vsyncpa [#allocation3], 0
    %8 = vsyncpa [#allocation6], 0
    %9 = vsyncpa [#allocation4], 0
    // Predicated region
    $region2: #{tpu_custom_call.1} parent=1 // pred_check
      _
    $region3: #{tpu_custom_call.1} parent=1 // pred_check_branch
      %11 = sbr.rel (0) target = $region5
    $region4: #{tpu_custom_call.1} parent=1 // pred_region
      %s13 = ssub.s32 16, 16
      %14 = vsyncadd [#allocation3], %s13
      %s16 = sshll.u32 [#allocation2], 4
      %s17 = int_to_ptr.vmem [resolvable:$true] %s16
      %19 = dma.hbm_to_vmem [thread:$0]  %s0, 16, %s17, [#allocation3]
    $region5: #{tpu_custom_call.1} parent=1 // pred_fallthru
      _
    // Predicated region
    $region6: #{tpu_custom_call.1} parent=1 // pred_check
      _
    $region7: #{tpu_custom_call.1} parent=1 // pred_check_branch
      %21 = sbr.rel (0) target = $region9
    $region8: #{tpu_custom_call.1} parent=1 // pred_region
      %s23 = ssub.s32 128, 128
      %24 = vsyncadd [#allocation6], %s23
      %s26 = sshll.u32 [#allocation5], 4
      %s27 = int_to_ptr.vmem [resolvable:$true] %s26
      %29 = dma.hbm_to_vmem [thread:$0]  %s1, 128, %s27, [#allocation6]
    $region9: #{tpu_custom_call.1} parent=1 // pred_fallthru
      _
    // Predicated region
    $region10: #{tpu_custom_call.1} parent=1 // pred_check
      _
    $region11: #{tpu_custom_call.1} parent=1 // pred_check_branch
      %31 = sbr.rel (0) target = $region13
    $region12: #{tpu_custom_call.1} parent=1 // pred_region
      %32 = dma.done [#allocation3], 16
    $region13: #{tpu_custom_call.1} parent=1 // pred_fallthru
      _
    // Predicated region
    $region14: #{tpu_custom_call.1} parent=1 // pred_check
      _
    $region15: #{tpu_custom_call.1} parent=1 // pred_check_branch
      %34 = sbr.rel (0) target = $region17
    $region16: #{tpu_custom_call.1} parent=1 // pred_region
      %35 = dma.done [#allocation6], 128
    $region17: #{tpu_custom_call.1} parent=1 // pred_fallthru
      _
    %v36 = vld [vmem:[#allocation2] sm:$0x1]
    %v37 = vlaneseq
    %v38 = vshrl.u32 %v37, 7
    %v39 = vlaneseq
    %v40 = vshrl.u32 %v39, 7
    %v41 = vsub.s32 0, %v40
    %v42 = vrot.slane %v36, %v41
    %vm43 = vcmp.eq.s32.totalorder %v42, %v38
    %v44 = vsel %vm43, 1, 0
    %v45 = vcvt.s32.f32 %v44
    %v46 = vld [vmem:[#allocation5] sm:$0xff]
    %47 = vxpose.xlu0.b32.start [1/16] %v45, 128
    %48 = vxpose.xlu0.b32.cont [2/16] 0.0, 128
    %49 = vxpose.xlu0.b32.cont [3/16] 0.0, 128
    %50 = vxpose.xlu0.b32.cont [4/16] 0.0, 128
    %51 = vxpose.xlu0.b32.cont [5/16] 0.0, 128
    %52 = vxpose.xlu0.b32.cont [6/16] 0.0, 128
    %53 = vxpose.xlu0.b32.cont [7/16] 0.0, 128
    %54 = vxpose.xlu0.b32.cont [8/16] 0.0, 128
    %55 = vxpose.xlu0.b32.cont [9/16] 0.0, 128
    %56 = vxpose.xlu0.b32.cont [10/16] 0.0, 128
    %57 = vxpose.xlu0.b32.cont [11/16] 0.0, 128
    %58 = vxpose.xlu0.b32.cont [12/16] 0.0, 128
    %59 = vxpose.xlu0.b32.cont [13/16] 0.0, 128
    %60 = vxpose.xlu0.b32.cont [14/16] 0.0, 128
    %61 = vxpose.xlu0.b32.cont [15/16] 0.0, 128
    %62 = vxpose.xlu0.b32.end [16/16] 0.0, 128
    %v63 = vpop.trf.xlu0
    %v64 = vpop.trf.xlu0
    %v65 = vpop.trf.xlu0
    %v66 = vpop.trf.xlu0
    %v67 = vpop.trf.xlu0
    %v68 = vpop.trf.xlu0
    %v69 = vpop.trf.xlu0
    %v70 = vpop.trf.xlu0
    %v71 = vpop.trf.xlu0
    %v72 = vpop.trf.xlu0
    %v73 = vpop.trf.xlu0
    %v74 = vpop.trf.xlu0
    %v75 = vpop.trf.xlu0
    %v76 = vpop.trf.xlu0
    %v77 = vpop.trf.xlu0
    %v78 = vpop.trf.xlu0
    %vm79 = vcmask 64512
    %v81 = vsel %vm79, %v63, 0
    %83 = vmatprep.subr.mxu0 0.0
    %84 = vmatpush1.msra.mxu0 %v46
    %85 = vmatprep.subr.mxu0 0.0
    %86 = vmatpush1.msra.mxu0 0.0
    %87 = vmatprep.subr.mxu0 0.0
    %88 = vmatpush1.msra.mxu0 0.0
    %89 = vmatprep.subr.mxu0 0.0
    %90 = vmatpush1.msra.mxu0 0.0
    %91 = vmatprep.subr.mxu0 0.0
    %92 = vmatpush1.msra.mxu0 0.0
    %93 = vmatprep.subr.mxu0 0.0
    %94 = vmatpush1.msra.mxu0 0.0
    %95 = vmatprep.subr.mxu0 0.0
    %96 = vmatpush1.msra.mxu0 0.0
    %97 = vmatprep.subr.mxu0 0.0
    %98 = vmatpush1.msra.mxu0 0.0
    %99 = vmatprep.subr.mxu0 0.0
    %100 = vmatpush1.msra.mxu0 0.0
    %101 = vmatprep.subr.mxu0 0.0
    %102 = vmatpush1.msra.mxu0 0.0
    %103 = vmatprep.subr.mxu0 0.0
    %104 = vmatpush1.msra.mxu0 0.0
    %105 = vmatprep.subr.mxu0 0.0
    %106 = vmatpush1.msra.mxu0 0.0
    %107 = vmatprep.subr.mxu0 0.0
    %108 = vmatpush1.msra.mxu0 0.0
    %109 = vmatprep.subr.mxu0 0.0
    %110 = vmatpush1.msra.mxu0 0.0
    %111 = vmatprep.subr.mxu0 0.0
    %112 = vmatpush1.msra.mxu0 0.0
    %113 = vmatprep.subr.mxu0 0.0
    %114 = vmatpush1.msra.mxu0 0.0
    %115 = vmatprep.subr.mxu0 0.0
    %116 = vmatpush1.msra.mxu0 0.0
    %117 = vmatprep.subr.mxu0 0.0
    %118 = vmatpush1.msra.mxu0 0.0
    %119 = vmatprep.subr.mxu0 0.0
    %120 = vmatpush1.msra.mxu0 0.0
    %121 = vmatprep.subr.mxu0 0.0
    %122 = vmatpush1.msra.mxu0 0.0
    %123 = vmatprep.subr.mxu0 0.0
    %124 = vmatpush1.msra.mxu0 0.0
    %125 = vmatprep.subr.mxu0 0.0
    %126 = vmatpush1.msra.mxu0 0.0
    %127 = vmatprep.subr.mxu0 0.0
    %128 = vmatpush1.msra.mxu0 0.0
    %129 = vmatprep.subr.mxu0 0.0
    %130 = vmatpush1.msra.mxu0 0.0
    %131 = vmatprep.subr.mxu0 0.0
    %132 = vmatpush1.msra.mxu0 0.0
    %133 = vmatprep.subr.mxu0 0.0
    %134 = vmatpush1.msra.mxu0 0.0
    %135 = vmatprep.subr.mxu0 0.0
    %136 = vmatpush1.msra.mxu0 0.0
    %137 = vmatprep.subr.mxu0 0.0
    %138 = vmatpush1.msra.mxu0 0.0
    %139 = vmatprep.subr.mxu0 0.0
    %140 = vmatpush1.msra.mxu0 0.0
    %141 = vmatprep.subr.mxu0 0.0
    %142 = vmatpush1.msra.mxu0 0.0
    %143 = vmatprep.subr.mxu0 0.0
    %144 = vmatpush1.msra.mxu0 0.0
    %145 = vmatprep.subr.mxu0 0.0
    %146 = vmatpush1.msra.mxu0 0.0
    %147 = vmatprep.mubr.f32.mxu0 0.0
    %148 = vmatmul.mubr.f32.gmra.mrb[0].mxu0 %v81
    %v149 = vpop.f32.mrb[0].mxu0
    %v150 = vadd.f32 0.0, %v149
    %v151 = vpop.f32.mrb[0].mxu0
    %152 = vdwg.mxu0
    %vm153 = vcmask 254976
    %154 = vst.msk [vmem:[#allocation7] sm:$0x3] %vm153, %v150
    // Predicated region
    $region18: #{tpu_custom_call.1} parent=1 // pred_check
      _
    $region19: #{tpu_custom_call.1} parent=1 // pred_check_branch
      %156 = sbr.rel (0) target = $region21
    $region20: #{tpu_custom_call.1} parent=1 // pred_region
      %s158 = ssub.s32 32, 32
      %159 = vsyncadd [#allocation4], %s158
      %s161 = sshll.u32 [#allocation7], 4
      %s162 = int_to_ptr.vmem [resolvable:$true] %s161
      %164 = dma.vmem_to_hbm [thread:$0]  %s162, 32, %s2, [#allocation4]
    $region21: #{tpu_custom_call.1} parent=1 // pred_fallthru
      _
    // Predicated region
    $region22: #{tpu_custom_call.1} parent=1 // pred_check
      _
    $region23: #{tpu_custom_call.1} parent=1 // pred_check_branch
      %166 = sbr.rel (0) target = $region25
    $region24: #{tpu_custom_call.1} parent=1 // pred_region
      %167 = dma.done [#allocation4], 32
    $region25: #{tpu_custom_call.1} parent=1 // pred_fallthru
      _
    %168 = vsyncpa [#allocation3], 1
    %169 = vsyncpa [#allocation6], 1
    %170 = vsyncpa [#allocation4], 1

</llo_original>
